<compile_context>
chip_gen: v5e
topology: v5e:2x2
jax: 0.10.0
libtpu: 0.0.40
codegen_flags: <defaults>
</compile_context>

<pallas_src>
import functools

import jax
import jax.numpy as jnp
from jax.experimental import pallas as pl
from jax.experimental.pallas import tpu as pltpu


# --------------------------------------------------------------------------- #
# Kernel helpers
# --------------------------------------------------------------------------- #
def _fold_rows(v, rs):
    """Sum groups of `rs` sublane rows: (TS, 128) -> (rs, 128).  Pure VPU adds."""
    ts = v.shape[0]
    if ts == rs:
        return v
    out = v[0:rs, :]
    for r in range(1, ts // rs):
        out = out + v[r * rs:(r + 1) * rs, :]
    return out


def _class_softmax(xs):
    """Softmax across a python list of per-class (TS,128) f32 tiles (VPU+EUP only)."""
    m = xs[0]
    for x in xs[1:]:
        m = jnp.maximum(m, x)
    es = [jnp.exp(x - m) for x in xs]
    den = es[0]
    for e in es[1:]:
        den = den + e
    inv = pl.reciprocal(den, approx=True)          # EUP vrcp
    return [e * inv for e in es]


def _valid_mask(ts, nt, hw):
    """(TS,128) mask of pixels that lie inside the un-padded image."""
    base = (pl.program_id(0) * nt + pl.program_id(2)) * (ts * 128)
    pix = (base
           + jax.lax.broadcasted_iota(jnp.int32, (ts, 128), 0) * 128
           + jax.lax.broadcasted_iota(jnp.int32, (ts, 128), 1))
    return pix < hw


# --------------------------------------------------------------------------- #
# Kernels
# --------------------------------------------------------------------------- #
def _label_stats_kernel(x_ref, lab_ref, out_ref, *, C, NT, ts, rs, hw, hw_pad):
    """Integer-label targets: the one-hot mask is rebuilt in-kernel."""
    k = pl.program_id(2)

    @pl.when(k == 0)
    def _():
        out_ref[...] = jnp.zeros_like(out_ref)

    # Class axis is a leading (un-tiled) dim -> per-class (TS,128) tiles.
    xs = [x_ref[0, c].astype(jnp.float32) for c in range(C)]
    ps = _class_softmax(xs)
    lab = lab_ref[0].astype(jnp.int32)                      # (TS, 128), padded with -1
    valid = _valid_mask(ts, NT, hw) if hw_pad != hw else None

    for c in range(C):
        p_c = ps[c]
        sel = lab == c
        inter = jnp.where(sel, p_c, 0.0)                    # p * onehot
        t_sum = jnp.where(sel, 1.0, 0.0)                    # onehot count
        p_sum = jnp.where(valid, p_c, 0.0) if valid is not None else p_c
        out_ref[0, 0 * C + c] += _fold_rows(inter, rs)
        out_ref[0, 1 * C + c] += _fold_rows(t_sum, rs)
        out_ref[0, 2 * C + c] += _fold_rows(p_sum, rs)


def _dense_stats_kernel(x_ref, t_ref, out_ref, *, C, NT, ts, rs, hw, hw_pad):
    """Dense (one-hot or soft) targets: exact MultiClassDiceLoss 4-D branch."""
    k = pl.program_id(2)

    @pl.when(k == 0)
    def _():
        out_ref[...] = jnp.zeros_like(out_ref)

    xs = [x_ref[0, c].astype(jnp.float32) for c in range(C)]
    ps = _class_softmax(xs)
    valid = _valid_mask(ts, NT, hw) if hw_pad != hw else None

    for c in range(C):
        p_c = ps[c]
        t_c = t_ref[0, c].astype(jnp.float32)               # padded pixels are 0
        p_sum = jnp.where(valid, p_c, 0.0) if valid is not None else p_c
        out_ref[0, 0 * C + c] += _fold_rows(p_c * t_c, rs)
        out_ref[0, 1 * C + c] += _fold_rows(t_c, rs)
        out_ref[0, 2 * C + c] += _fold_rows(p_sum, rs)


# --------------------------------------------------------------------------- #
# Tiling plan
# --------------------------------------------------------------------------- #
def _min_rows(dtype):
    # Minimum second-to-minor block extent per dtype: (8,128) f32 / (16,128) bf16 / (32,128) i8.
    return max(8, 32 // dtype.itemsize)


def _plan(hw, n_classes, tiled_dtypes):
    """Pick (ts, rs, n_chunks, nt, hw_pad) for the spatial tiling."""
    s0 = pl.cdiv(hw, 128)
    min_rows = max(_min_rows(d) for d in tiled_dtypes)

    if s0 < 32:
        # Small images: one full-extent block (full-dim blocks are legal for any dtype).
        ts = s0
        rs = 8 if ts % 8 == 0 else ts
        return ts, rs, 1, 1, s0 * 128

    # Conservative per-step VMEM budget (v5e's 16 MiB scoped default is the tightest):
    # double-buffered input blocks + ~6 f32 softmax temporaries per class, plus the
    # resident lane-dense output accumulator.
    budget = 10 << 20
    in_bytes = sum(2 * d.itemsize for d in tiled_dtypes)        # double-buffered inputs
    per_row = 128 * (n_classes * (in_bytes + 6 * 4) + 8)
    fixed = 2 * 3 * n_classes * 8 * 128 * 4

    ts = min_rows
    for cand in (256, 128, 64, 32, 16, 8):
        if cand < min_rows or cand > s0:
            continue
        if cand * per_row + fixed <= budget:
            ts = cand
            break

    nt_total = pl.cdiv(s0, ts)
    if nt_total == 1 and ts >= 64:
        # Split a single big tile so the spatial 'parallel' axis can feed 2 TCs (v7x).
        ts //= 2
        nt_total = 2
    rs = 8 if ts % 8 == 0 else ts
    n_chunks = 2 if nt_total >= 2 else 1
    nt = pl.cdiv(nt_total, n_chunks)
    return ts, rs, n_chunks, nt, n_chunks * nt * ts * 128


# --------------------------------------------------------------------------- #
# Wrapper
# --------------------------------------------------------------------------- #
def multiclass_dice_loss(inputs, targets, epsilon=1.0, weight=None):
    """MultiClassDiceLoss forward.

    inputs:  (N, C, H, W) logits (float32 or bfloat16; cast to f32 in-kernel only).
    targets: (N, C, H, W) dense one-hot / soft targets (module's 4-D branch), or
             (N, H, W) integer class labels (optimized path, equivalent to one-hot).
    """
    N, C, H, W = inputs.shape
    HW = H * W
    dense = targets.ndim == 4
    # TODO(synk): the module's 3-D *float*-target branch (binary dice of softmax[:,1]
    # against a float mask) is not kernelized; 3-D targets are treated as class labels.

    tiled_dtypes = [inputs.dtype] + ([targets.dtype] if dense else [])
    ts, rs, P, NT, HW_pad = _plan(HW, C, tiled_dtypes)
    S = HW_pad // 128
    pad = HW_pad - HW

    x = inputs.reshape(N, C, HW)
    if pad:
        x = jnp.pad(x, ((0, 0), (0, 0), (0, pad)))             # softmax(0s) is finite; masked
    x = x.reshape(N, C, S, 128)
    x_spec = pl.BlockSpec((1, C, ts, 128), lambda p, n, k: (n, 0, p * NT + k, 0))

    if dense:
        t = targets.reshape(N, C, HW)
        if pad:
            t = jnp.pad(t, ((0, 0), (0, 0), (0, pad)))          # zero targets in the pad
        t_arg = t.reshape(N, C, S, 128)
        t_spec = pl.BlockSpec((1, C, ts, 128), lambda p, n, k: (n, 0, p * NT + k, 0))
        kernel = _dense_stats_kernel
    else:
        lab_dtype = jnp.int8 if (C <= 127 and (ts % 32 == 0 or ts == S)) else jnp.int32
        lab = targets.reshape(N, HW).astype(lab_dtype)
        if pad:
            lab = jnp.pad(lab, ((0, 0), (0, pad)), constant_values=-1)
        t_arg = lab.reshape(N, S, 128)
        t_spec = pl.BlockSpec((1, ts, 128), lambda p, n, k: (n, p * NT + k, 0))
        kernel = _label_stats_kernel

    kernel = functools.partial(kernel, C=C, NT=NT, ts=ts, rs=rs, hw=HW, hw_pad=HW_pad)

    out_spec = pl.BlockSpec((1, 3 * C, rs, 128), lambda p, n, k: (p * N + n, 0, 0, 0))
    t_bytes = t_arg.size * t_arg.dtype.itemsize
    cost = pl.CostEstimate(
        flops=int(12 * N * C * HW_pad),
        transcendentals=int(N * HW_pad * (C + 1)),
        bytes_accessed=int(x.size * x.dtype.itemsize + t_bytes
                           + P * N * 3 * C * rs * 128 * 4),
    )

    partial_stats = pl.pallas_call(
        kernel,
        out_shape=jax.ShapeDtypeStruct((P * N, 3 * C, rs, 128), jnp.float32),
        grid=(P, N, NT),
        in_specs=[x_spec, t_spec],
        out_specs=out_spec,
        compiler_params=pltpu.CompilerParams(
            dimension_semantics=("parallel", "parallel", "arbitrary")),
        cost_estimate=cost,
    )(x, t_arg)

    # Tiny O(N*C*rs*128) final reduction + dice combine in plain JAX.
    stats = partial_stats.reshape(P, N, 3, C, rs * 128).sum(axis=(0, 4))   # (N, 3, C)
    inter, t_sum, p_sum = stats[:, 0], stats[:, 1], stats[:, 2]
    loss_nc = 1.0 - (2.0 * inter + epsilon) / (t_sum + p_sum + epsilon)
    per_class = jnp.sum(loss_nc, axis=0) / N                   # DiceLoss(reduction='mean')
    if weight is not None:
        per_class = per_class * jnp.asarray(weight, per_class.dtype)
    return jnp.sum(per_class)                                  # sum over classes


# --------------------------------------------------------------------------- #
# Pure-JAX reference (replicates the PyTorch MultiClassDiceLoss / DiceLoss modules)
# --------------------------------------------------------------------------- #
def _reference_multiclass_dice(inputs, targets_dense, epsilon=1.0, weight=None):
    N, C, H, W = inputs.shape
    p = jax.nn.softmax(inputs.astype(jnp.float32), axis=1)
    tot = 0.0
    for c in range(C):
        y = p[:, c].reshape(N, -1)
        t = targets_dense[:, c].reshape(N, -1).astype(jnp.float32)
        inter = jnp.sum(y * t, axis=1)
        union = jnp.sum(t, axis=1) + jnp.sum(y, axis=1)
        loss = 1.0 - (2.0 * inter + epsilon) / (union + epsilon)
        d = jnp.sum(loss) / N
        if weight is not None:
            d = d * weight[c]
        tot = tot + d
    return tot


if __name__ == "__main__":
    key = jax.random.PRNGKey(0)
    k1, k2, k3, k4 = jax.random.split(key, 4)

    # Aligned case: N=2, C=4, 16x16 (H*W multiple of 128 -> no padding / masking).
    N, C, H, W = 2, 4, 16, 16
    logits = jax.random.normal(k1, (N, C, H, W), dtype=jnp.float32)
    labels = jax.random.randint(k2, (N, H, W), 0, C)
    onehot = jnp.transpose(jax.nn.one_hot(labels, C, dtype=jnp.float32), (0, 3, 1, 2))

    ref = _reference_multiclass_dice(logits, onehot)
    loss_dense = jax.block_until_ready(multiclass_dice_loss(logits, onehot))
    loss_label = jax.block_until_ready(multiclass_dice_loss(logits, labels))
    assert jnp.isfinite(loss_dense) and jnp.isfinite(loss_label)
    assert abs(float(loss_dense) - float(ref)) < 5e-3, (float(loss_dense), float(ref))
    assert abs(float(loss_label) - float(ref)) < 5e-3, (float(loss_label), float(ref))

    # Class weights + bf16 logits (kept bf16 in HBM, cast to f32 only in-kernel).
    wgt = jnp.array([0.1, 0.2, 0.3, 0.4], jnp.float32)
    ref_w = _reference_multiclass_dice(logits, onehot, weight=wgt)
    loss_w = jax.block_until_ready(
        multiclass_dice_loss(logits.astype(jnp.bfloat16), onehot, weight=wgt))
    assert abs(float(loss_w) - float(ref_w)) < 2e-2, (float(loss_w), float(ref_w))

    # Non-128-multiple spatial size exercises the padding + in-kernel pixel mask.
    Hs, Ws = 10, 10
    logits_s = jax.random.normal(k3, (N, C, Hs, Ws), dtype=jnp.float32)
    labels_s = jax.random.randint(k4, (N, Hs, Ws), 0, C)
    onehot_s = jnp.transpose(jax.nn.one_hot(labels_s, C, dtype=jnp.float32), (0, 3, 1, 2))
    ref_s = _reference_multiclass_dice(logits_s, onehot_s)
    loss_s_dense = jax.block_until_ready(multiclass_dice_loss(logits_s, onehot_s))
    loss_s_label = jax.block_until_ready(multiclass_dice_loss(logits_s, labels_s))
    assert abs(float(loss_s_dense) - float(ref_s)) < 5e-3, (float(loss_s_dense), float(ref_s))
    assert abs(float(loss_s_label) - float(ref_s)) < 5e-3, (float(loss_s_label), float(ref_s))

    print("KERNEL_OK")
</pallas_src>

<mosaic_0001>
module attributes {stable_mosaic.version = 11 : i64} {
  func.func @_dense_stats_kernel(%arg0: i32, %arg1: i32, %arg2: i32, %arg3: memref<1x4x2x128xf32, #tpu.memory_space<vmem>>, %arg4: memref<1x4x2x128xf32, #tpu.memory_space<vmem>>, %arg5: memref<1x12x2x128xf32, #tpu.memory_space<vmem>>) attributes {dimension_semantics = [#tpu.dimension_semantics<parallel>, #tpu.dimension_semantics<parallel>, #tpu.dimension_semantics<arbitrary>], iteration_bounds = array<i64: 1, 2, 1>, scalar_prefetch = 0 : i64, scratch_operands = 0 : i64, tpu.core_type = #tpu.core_type<tc>, window_params = [{transform_indices = @transform_0, window_bounds = array<i64: 1, 4, 2, 128>}, {transform_indices = @transform_1, window_bounds = array<i64: 1, 4, 2, 128>}, {transform_indices = @transform_2, window_bounds = array<i64: 1, 12, 2, 128>}]} {
    %c0_i32 = arith.constant 0 : i32
    %0 = arith.cmpi eq, %arg2, %c0_i32 : i32
    %1 = arith.extui %0 : i1 to i32
    %c0_i32_0 = arith.constant 0 : i32
    %2 = arith.cmpi ne, %1, %c0_i32_0 : i32
    scf.if %2 {
      %cst = arith.constant 0.000000e+00 : f32
      %114 = vector.broadcast %cst : f32 to vector<1x12x2x128xf32>
      %c0_117 = arith.constant 0 : index
      %c0_118 = arith.constant 0 : index
      %c0_119 = arith.constant 0 : index
      %c0_120 = arith.constant 0 : index
      %115 = vector.load %arg5[%c0_117, %c0_118, %c0_119, %c0_120] : memref<1x12x2x128xf32, #tpu.memory_space<vmem>>, vector<1x12x2x128xf32>
      tpu.vector_store %arg5[%c0_117, %c0_118, %c0_119, %c0_120], %114 {strides = array<i32>} : memref<1x12x2x128xf32, #tpu.memory_space<vmem>>, vector<1x12x2x128xf32>,
    } else {
    }
    %c0 = arith.constant 0 : index
    %c0_1 = arith.constant 0 : index
    %c0_2 = arith.constant 0 : index
    %c0_3 = arith.constant 0 : index
    %3 = vector.load %arg3[%c0, %c0_1, %c0_2, %c0_3] : memref<1x4x2x128xf32, #tpu.memory_space<vmem>>, vector<1x1x2x128xf32>
    %4 = vector.shape_cast %3 : vector<1x1x2x128xf32> to vector<2x128xf32>
    %c0_4 = arith.constant 0 : index
    %c1 = arith.constant 1 : index
    %c0_5 = arith.constant 0 : index
    %c0_6 = arith.constant 0 : index
    %5 = vector.load %arg3[%c0_4, %c1, %c0_5, %c0_6] : memref<1x4x2x128xf32, #tpu.memory_space<vmem>>, vector<1x1x2x128xf32>
    %6 = vector.shape_cast %5 : vector<1x1x2x128xf32> to vector<2x128xf32>
    %c0_7 = arith.constant 0 : index
    %c2 = arith.constant 2 : index
    %c0_8 = arith.constant 0 : index
    %c0_9 = arith.constant 0 : index
    %7 = vector.load %arg3[%c0_7, %c2, %c0_8, %c0_9] : memref<1x4x2x128xf32, #tpu.memory_space<vmem>>, vector<1x1x2x128xf32>
    %8 = vector.shape_cast %7 : vector<1x1x2x128xf32> to vector<2x128xf32>
    %c0_10 = arith.constant 0 : index
    %c3 = arith.constant 3 : index
    %c0_11 = arith.constant 0 : index
    %c0_12 = arith.constant 0 : index
    %9 = vector.load %arg3[%c0_10, %c3, %c0_11, %c0_12] : memref<1x4x2x128xf32, #tpu.memory_space<vmem>>, vector<1x1x2x128xf32>
    %10 = vector.shape_cast %9 : vector<1x1x2x128xf32> to vector<2x128xf32>
    %11 = arith.maximumf %4, %6 : vector<2x128xf32>
    %12 = arith.maximumf %11, %8 : vector<2x128xf32>
    %13 = arith.maximumf %12, %10 : vector<2x128xf32>
    %14 = arith.subf %4, %13 : vector<2x128xf32>
    %15 = math.exp %14 : vector<2x128xf32>
    %16 = arith.subf %6, %13 : vector<2x128xf32>
    %17 = math.exp %16 : vector<2x128xf32>
    %18 = arith.subf %8, %13 : vector<2x128xf32>
    %19 = math.exp %18 : vector<2x128xf32>
    %20 = arith.subf %10, %13 : vector<2x128xf32>
    %21 = math.exp %20 : vector<2x128xf32>
    %22 = arith.addf %15, %17 : vector<2x128xf32>
    %23 = arith.addf %22, %19 : vector<2x128xf32>
    %24 = arith.addf %23, %21 : vector<2x128xf32>
    %25 = tpu.reciprocal %24 {approx = true} : vector<2x128xf32> -> vector<2x128xf32>
    %26 = arith.mulf %15, %25 : vector<2x128xf32>
    %27 = arith.mulf %17, %25 : vector<2x128xf32>
    %28 = arith.mulf %19, %25 : vector<2x128xf32>
    %29 = arith.mulf %21, %25 : vector<2x128xf32>
    %c0_13 = arith.constant 0 : index
    %c0_14 = arith.constant 0 : index
    %c0_15 = arith.constant 0 : index
    %c0_16 = arith.constant 0 : index
    %30 = vector.load %arg4[%c0_13, %c0_14, %c0_15, %c0_16] : memref<1x4x2x128xf32, #tpu.memory_space<vmem>>, vector<1x1x2x128xf32>
    %31 = vector.shape_cast %30 : vector<1x1x2x128xf32> to vector<2x128xf32>
    %c0_17 = arith.constant 0 : index
    %c0_18 = arith.constant 0 : index
    %c0_19 = arith.constant 0 : index
    %c0_20 = arith.constant 0 : index
    %32 = vector.load %arg5[%c0_17, %c0_18, %c0_19, %c0_20] : memref<1x12x2x128xf32, #tpu.memory_space<vmem>>, vector<1x1x2x128xf32>
    %33 = vector.shape_cast %32 : vector<1x1x2x128xf32> to vector<2x128xf32>
    %34 = arith.mulf %26, %31 : vector<2x128xf32>
    %35 = arith.addf %33, %34 : vector<2x128xf32>
    %c0_21 = arith.constant 0 : index
    %c0_22 = arith.constant 0 : index
    %c0_23 = arith.constant 0 : index
    %c0_24 = arith.constant 0 : index
    %36 = vector.load %arg5[%c0_21, %c0_22, %c0_23, %c0_24] : memref<1x12x2x128xf32, #tpu.memory_space<vmem>>, vector<1x1x2x128xf32>
    %37 = vector.shape_cast %36 : vector<1x1x2x128xf32> to vector<2x128xf32>
    %38 = vector.shape_cast %35 : vector<2x128xf32> to vector<1x1x2x128xf32>
    tpu.vector_store %arg5[%c0_21, %c0_22, %c0_23, %c0_24], %38 {strides = array<i32>} : memref<1x12x2x128xf32, #tpu.memory_space<vmem>>, vector<1x1x2x128xf32>,
    %c0_25 = arith.constant 0 : index
    %c4 = arith.constant 4 : index
    %c0_26 = arith.constant 0 : index
    %c0_27 = arith.constant 0 : index
    %39 = vector.load %arg5[%c0_25, %c4, %c0_26, %c0_27] : memref<1x12x2x128xf32, #tpu.memory_space<vmem>>, vector<1x1x2x128xf32>
    %40 = vector.shape_cast %39 : vector<1x1x2x128xf32> to vector<2x128xf32>
    %41 = arith.addf %40, %31 : vector<2x128xf32>
    %c0_28 = arith.constant 0 : index
    %c4_29 = arith.constant 4 : index
    %c0_30 = arith.constant 0 : index
    %c0_31 = arith.constant 0 : index
    %42 = vector.load %arg5[%c0_28, %c4_29, %c0_30, %c0_31] : memref<1x12x2x128xf32, #tpu.memory_space<vmem>>, vector<1x1x2x128xf32>
    %43 = vector.shape_cast %42 : vector<1x1x2x128xf32> to vector<2x128xf32>
    %44 = vector.shape_cast %41 : vector<2x128xf32> to vector<1x1x2x128xf32>
    tpu.vector_store %arg5[%c0_28, %c4_29, %c0_30, %c0_31], %44 {strides = array<i32>} : memref<1x12x2x128xf32, #tpu.memory_space<vmem>>, vector<1x1x2x128xf32>,
    %c0_32 = arith.constant 0 : index
    %c8 = arith.constant 8 : index
    %c0_33 = arith.constant 0 : index
    %c0_34 = arith.constant 0 : index
    %45 = vector.load %arg5[%c0_32, %c8, %c0_33, %c0_34] : memref<1x12x2x128xf32, #tpu.memory_space<vmem>>, vector<1x1x2x128xf32>
    %46 = vector.shape_cast %45 : vector<1x1x2x128xf32> to vector<2x128xf32>
    %47 = arith.addf %46, %26 : vector<2x128xf32>
    %c0_35 = arith.constant 0 : index
    %c8_36 = arith.constant 8 : index
    %c0_37 = arith.constant 0 : index
    %c0_38 = arith.constant 0 : index
    %48 = vector.load %arg5[%c0_35, %c8_36, %c0_37, %c0_38] : memref<1x12x2x128xf32, #tpu.memory_space<vmem>>, vector<1x1x2x128xf32>
    %49 = vector.shape_cast %48 : vector<1x1x2x128xf32> to vector<2x128xf32>
    %50 = vector.shape_cast %47 : vector<2x128xf32> to vector<1x1x2x128xf32>
    tpu.vector_store %arg5[%c0_35, %c8_36, %c0_37, %c0_38], %50 {strides = array<i32>} : memref<1x12x2x128xf32, #tpu.memory_space<vmem>>, vector<1x1x2x128xf32>,
    %c0_39 = arith.constant 0 : index
    %c1_40 = arith.constant 1 : index
    %c0_41 = arith.constant 0 : index
    %c0_42 = arith.constant 0 : index
    %51 = vector.load %arg4[%c0_39, %c1_40, %c0_41, %c0_42] : memref<1x4x2x128xf32, #tpu.memory_space<vmem>>, vector<1x1x2x128xf32>
    %52 = vector.shape_cast %51 : vector<1x1x2x128xf32> to vector<2x128xf32>
    %c0_43 = arith.constant 0 : index
    %c1_44 = arith.constant 1 : index
    %c0_45 = arith.constant 0 : index
    %c0_46 = arith.constant 0 : index
    %53 = vector.load %arg5[%c0_43, %c1_44, %c0_45, %c0_46] : memref<1x12x2x128xf32, #tpu.memory_space<vmem>>, vector<1x1x2x128xf32>
    %54 = vector.shape_cast %53 : vector<1x1x2x128xf32> to vector<2x128xf32>
    %55 = arith.mulf %27, %52 : vector<2x128xf32>
    %56 = arith.addf %54, %55 : vector<2x128xf32>
    %c0_47 = arith.constant 0 : index
    %c1_48 = arith.constant 1 : index
    %c0_49 = arith.constant 0 : index
    %c0_50 = arith.constant 0 : index
    %57 = vector.load %arg5[%c0_47, %c1_48, %c0_49, %c0_50] : memref<1x12x2x128xf32, #tpu.memory_space<vmem>>, vector<1x1x2x128xf32>
    %58 = vector.shape_cast %57 : vector<1x1x2x128xf32> to vector<2x128xf32>
    %59 = vector.shape_cast %56 : vector<2x128xf32> to vector<1x1x2x128xf32>
    tpu.vector_store %arg5[%c0_47, %c1_48, %c0_49, %c0_50], %59 {strides = array<i32>} : memref<1x12x2x128xf32, #tpu.memory_space<vmem>>, vector<1x1x2x128xf32>,
    %c0_51 = arith.constant 0 : index
    %c5 = arith.constant 5 : index
    %c0_52 = arith.constant 0 : index
    %c0_53 = arith.constant 0 : index
    %60 = vector.load %arg5[%c0_51, %c5, %c0_52, %c0_53] : memref<1x12x2x128xf32, #tpu.memory_space<vmem>>, vector<1x1x2x128xf32>
    %61 = vector.shape_cast %60 : vector<1x1x2x128xf32> to vector<2x128xf32>
    %62 = arith.addf %61, %52 : vector<2x128xf32>
    %c0_54 = arith.constant 0 : index
    %c5_55 = arith.constant 5 : index
    %c0_56 = arith.constant 0 : index
    %c0_57 = arith.constant 0 : index
    %63 = vector.load %arg5[%c0_54, %c5_55, %c0_56, %c0_57] : memref<1x12x2x128xf32, #tpu.memory_space<vmem>>, vector<1x1x2x128xf32>
    %64 = vector.shape_cast %63 : vector<1x1x2x128xf32> to vector<2x128xf32>
    %65 = vector.shape_cast %62 : vector<2x128xf32> to vector<1x1x2x128xf32>
    tpu.vector_store %arg5[%c0_54, %c5_55, %c0_56, %c0_57], %65 {strides = array<i32>} : memref<1x12x2x128xf32, #tpu.memory_space<vmem>>, vector<1x1x2x128xf32>,
    %c0_58 = arith.constant 0 : index
    %c9 = arith.constant 9 : index
    %c0_59 = arith.constant 0 : index
    %c0_60 = arith.constant 0 : index
    %66 = vector.load %arg5[%c0_58, %c9, %c0_59, %c0_60] : memref<1x12x2x128xf32, #tpu.memory_space<vmem>>, vector<1x1x2x128xf32>
    %67 = vector.shape_cast %66 : vector<1x1x2x128xf32> to vector<2x128xf32>
    %68 = arith.addf %67, %27 : vector<2x128xf32>
    %c0_61 = arith.constant 0 : index
    %c9_62 = arith.constant 9 : index
    %c0_63 = arith.constant 0 : index
    %c0_64 = arith.constant 0 : index
    %69 = vector.load %arg5[%c0_61, %c9_62, %c0_63, %c0_64] : memref<1x12x2x128xf32, #tpu.memory_space<vmem>>, vector<1x1x2x128xf32>
    %70 = vector.shape_cast %69 : vector<1x1x2x128xf32> to vector<2x128xf32>
    %71 = vector.shape_cast %68 : vector<2x128xf32> to vector<1x1x2x128xf32>
    tpu.vector_store %arg5[%c0_61, %c9_62, %c0_63, %c0_64], %71 {strides = array<i32>} : memref<1x12x2x128xf32, #tpu.memory_space<vmem>>, vector<1x1x2x128xf32>,
    %c0_65 = arith.constant 0 : index
    %c2_66 = arith.constant 2 : index
    %c0_67 = arith.constant 0 : index
    %c0_68 = arith.constant 0 : index
    %72 = vector.load %arg4[%c0_65, %c2_66, %c0_67, %c0_68] : memref<1x4x2x128xf32, #tpu.memory_space<vmem>>, vector<1x1x2x128xf32>
    %73 = vector.shape_cast %72 : vector<1x1x2x128xf32> to vector<2x128xf32>
    %c0_69 = arith.constant 0 : index
    %c2_70 = arith.constant 2 : index
    %c0_71 = arith.constant 0 : index
    %c0_72 = arith.constant 0 : index
    %74 = vector.load %arg5[%c0_69, %c2_70, %c0_71, %c0_72] : memref<1x12x2x128xf32, #tpu.memory_space<vmem>>, vector<1x1x2x128xf32>
    %75 = vector.shape_cast %74 : vector<1x1x2x128xf32> to vector<2x128xf32>
    %76 = arith.mulf %28, %73 : vector<2x128xf32>
    %77 = arith.addf %75, %76 : vector<2x128xf32>
    %c0_73 = arith.constant 0 : index
    %c2_74 = arith.constant 2 : index
    %c0_75 = arith.constant 0 : index
    %c0_76 = arith.constant 0 : index
    %78 = vector.load %arg5[%c0_73, %c2_74, %c0_75, %c0_76] : memref<1x12x2x128xf32, #tpu.memory_space<vmem>>, vector<1x1x2x128xf32>
    %79 = vector.shape_cast %78 : vector<1x1x2x128xf32> to vector<2x128xf32>
    %80 = vector.shape_cast %77 : vector<2x128xf32> to vector<1x1x2x128xf32>
    tpu.vector_store %arg5[%c0_73, %c2_74, %c0_75, %c0_76], %80 {strides = array<i32>} : memref<1x12x2x128xf32, #tpu.memory_space<vmem>>, vector<1x1x2x128xf32>,
    %c0_77 = arith.constant 0 : index
    %c6 = arith.constant 6 : index
    %c0_78 = arith.constant 0 : index
    %c0_79 = arith.constant 0 : index
    %81 = vector.load %arg5[%c0_77, %c6, %c0_78, %c0_79] : memref<1x12x2x128xf32, #tpu.memory_space<vmem>>, vector<1x1x2x128xf32>
    %82 = vector.shape_cast %81 : vector<1x1x2x128xf32> to vector<2x128xf32>
    %83 = arith.addf %82, %73 : vector<2x128xf32>
    %c0_80 = arith.constant 0 : index
    %c6_81 = arith.constant 6 : index
    %c0_82 = arith.constant 0 : index
    %c0_83 = arith.constant 0 : index
    %84 = vector.load %arg5[%c0_80, %c6_81, %c0_82, %c0_83] : memref<1x12x2x128xf32, #tpu.memory_space<vmem>>, vector<1x1x2x128xf32>
    %85 = vector.shape_cast %84 : vector<1x1x2x128xf32> to vector<2x128xf32>
    %86 = vector.shape_cast %83 : vector<2x128xf32> to vector<1x1x2x128xf32>
    tpu.vector_store %arg5[%c0_80, %c6_81, %c0_82, %c0_83], %86 {strides = array<i32>} : memref<1x12x2x128xf32, #tpu.memory_space<vmem>>, vector<1x1x2x128xf32>,
    %c0_84 = arith.constant 0 : index
    %c10 = arith.constant 10 : index
    %c0_85 = arith.constant 0 : index
    %c0_86 = arith.constant 0 : index
    %87 = vector.load %arg5[%c0_84, %c10, %c0_85, %c0_86] : memref<1x12x2x128xf32, #tpu.memory_space<vmem>>, vector<1x1x2x128xf32>
    %88 = vector.shape_cast %87 : vector<1x1x2x128xf32> to vector<2x128xf32>
    %89 = arith.addf %88, %28 : vector<2x128xf32>
    %c0_87 = arith.constant 0 : index
    %c10_88 = arith.constant 10 : index
    %c0_89 = arith.constant 0 : index
    %c0_90 = arith.constant 0 : index
    %90 = vector.load %arg5[%c0_87, %c10_88, %c0_89, %c0_90] : memref<1x12x2x128xf32, #tpu.memory_space<vmem>>, vector<1x1x2x128xf32>
    %91 = vector.shape_cast %90 : vector<1x1x2x128xf32> to vector<2x128xf32>
    %92 = vector.shape_cast %89 : vector<2x128xf32> to vector<1x1x2x128xf32>
    tpu.vector_store %arg5[%c0_87, %c10_88, %c0_89, %c0_90], %92 {strides = array<i32>} : memref<1x12x2x128xf32, #tpu.memory_space<vmem>>, vector<1x1x2x128xf32>,
    %c0_91 = arith.constant 0 : index
    %c3_92 = arith.constant 3 : index
    %c0_93 = arith.constant 0 : index
    %c0_94 = arith.constant 0 : index
    %93 = vector.load %arg4[%c0_91, %c3_92, %c0_93, %c0_94] : memref<1x4x2x128xf32, #tpu.memory_space<vmem>>, vector<1x1x2x128xf32>
    %94 = vector.shape_cast %93 : vector<1x1x2x128xf32> to vector<2x128xf32>
    %c0_95 = arith.constant 0 : index
    %c3_96 = arith.constant 3 : index
    %c0_97 = arith.constant 0 : index
    %c0_98 = arith.constant 0 : index
    %95 = vector.load %arg5[%c0_95, %c3_96, %c0_97, %c0_98] : memref<1x12x2x128xf32, #tpu.memory_space<vmem>>, vector<1x1x2x128xf32>
    %96 = vector.shape_cast %95 : vector<1x1x2x128xf32> to vector<2x128xf32>
    %97 = arith.mulf %29, %94 : vector<2x128xf32>
    %98 = arith.addf %96, %97 : vector<2x128xf32>
    %c0_99 = arith.constant 0 : index
    %c3_100 = arith.constant 3 : index
    %c0_101 = arith.constant 0 : index
    %c0_102 = arith.constant 0 : index
    %99 = vector.load %arg5[%c0_99, %c3_100, %c0_101, %c0_102] : memref<1x12x2x128xf32, #tpu.memory_space<vmem>>, vector<1x1x2x128xf32>
    %100 = vector.shape_cast %99 : vector<1x1x2x128xf32> to vector<2x128xf32>
    %101 = vector.shape_cast %98 : vector<2x128xf32> to vector<1x1x2x128xf32>
    tpu.vector_store %arg5[%c0_99, %c3_100, %c0_101, %c0_102], %101 {strides = array<i32>} : memref<1x12x2x128xf32, #tpu.memory_space<vmem>>, vector<1x1x2x128xf32>,
    %c0_103 = arith.constant 0 : index
    %c7 = arith.constant 7 : index
    %c0_104 = arith.constant 0 : index
    %c0_105 = arith.constant 0 : index
    %102 = vector.load %arg5[%c0_103, %c7, %c0_104, %c0_105] : memref<1x12x2x128xf32, #tpu.memory_space<vmem>>, vector<1x1x2x128xf32>
    %103 = vector.shape_cast %102 : vector<1x1x2x128xf32> to vector<2x128xf32>
    %104 = arith.addf %103, %94 : vector<2x128xf32>
    %c0_106 = arith.constant 0 : index
    %c7_107 = arith.constant 7 : index
    %c0_108 = arith.constant 0 : index
    %c0_109 = arith.constant 0 : index
    %105 = vector.load %arg5[%c0_106, %c7_107, %c0_108, %c0_109] : memref<1x12x2x128xf32, #tpu.memory_space<vmem>>, vector<1x1x2x128xf32>
    %106 = vector.shape_cast %105 : vector<1x1x2x128xf32> to vector<2x128xf32>
    %107 = vector.shape_cast %104 : vector<2x128xf32> to vector<1x1x2x128xf32>
    tpu.vector_store %arg5[%c0_106, %c7_107, %c0_108, %c0_109], %107 {strides = array<i32>} : memref<1x12x2x128xf32, #tpu.memory_space<vmem>>, vector<1x1x2x128xf32>,
    %c0_110 = arith.constant 0 : index
    %c11 = arith.constant 11 : index
    %c0_111 = arith.constant 0 : index
    %c0_112 = arith.constant 0 : index
    %108 = vector.load %arg5[%c0_110, %c11, %c0_111, %c0_112] : memref<1x12x2x128xf32, #tpu.memory_space<vmem>>, vector<1x1x2x128xf32>
    %109 = vector.shape_cast %108 : vector<1x1x2x128xf32> to vector<2x128xf32>
    %110 = arith.addf %109, %29 : vector<2x128xf32>
    %c0_113 = arith.constant 0 : index
    %c11_114 = arith.constant 11 : index
    %c0_115 = arith.constant 0 : index
    %c0_116 = arith.constant 0 : index
    %111 = vector.load %arg5[%c0_113, %c11_114, %c0_115, %c0_116] : memref<1x12x2x128xf32, #tpu.memory_space<vmem>>, vector<1x1x2x128xf32>
    %112 = vector.shape_cast %111 : vector<1x1x2x128xf32> to vector<2x128xf32>
    %113 = vector.shape_cast %110 : vector<2x128xf32> to vector<1x1x2x128xf32>
    tpu.vector_store %arg5[%c0_113, %c11_114, %c0_115, %c0_116], %113 {strides = array<i32>} : memref<1x12x2x128xf32, #tpu.memory_space<vmem>>, vector<1x1x2x128xf32>,
    return
  }
  func.func @transform_0(%arg0: i32, %arg1: i32, %arg2: i32) -> (i32, i32, i32, i32) {
    %c1_i32 = arith.constant 1 : i32
    %0 = arith.muli %arg0, %c1_i32 : i32
    %1 = arith.addi %0, %arg2 : i32
    %c0_i32 = arith.constant 0 : i32
    %c0_i32_0 = arith.constant 0 : i32
    %c0_i32_1 = arith.constant 0 : i32
    return %arg1, %c0_i32, %1, %c0_i32_0 : i32, i32, i32, i32
  }
  func.func @transform_1(%arg0: i32, %arg1: i32, %arg2: i32) -> (i32, i32, i32, i32) {
    %c1_i32 = arith.constant 1 : i32
    %0 = arith.muli %arg0, %c1_i32 : i32
    %1 = arith.addi %0, %arg2 : i32
    %c0_i32 = arith.constant 0 : i32
    %c0_i32_0 = arith.constant 0 : i32
    %c0_i32_1 = arith.constant 0 : i32
    return %arg1, %c0_i32, %1, %c0_i32_0 : i32, i32, i32, i32
  }
  func.func @transform_2(%arg0: i32, %arg1: i32, %arg2: i32) -> (i32, i32, i32, i32) {
    %c2_i32 = arith.constant 2 : i32
    %0 = arith.muli %arg0, %c2_i32 : i32
    %1 = arith.addi %0, %arg1 : i32
    %c0_i32 = arith.constant 0 : i32
    %c0_i32_0 = arith.constant 0 : i32
    %c0_i32_1 = arith.constant 0 : i32
    %c0_i32_2 = arith.constant 0 : i32
    return %1, %c0_i32, %c0_i32_0, %c0_i32_1 : i32, i32, i32, i32
  }
}

</mosaic_0001>

<llo_original>
// kernel: tpu_custom_call.1
$region0: #{tpu_custom_call.1}
  #allocation0 [shape = 'u32[]', space=smem, size = 0x4, offset = 0x4, fixed_abs, tag = 'smem constant byte address 0x4 - core index']
  #allocation1 [shape = 'u32[72,128]{1,0:T(1,128)}', space=vmem, size = 0x9000, scoped, tag = 'internal scratch']
  %s0 = inlined_call_operand.hbm [shape: f32[2,4,2,128], index: 0, kind: input, shape index: {}]
  %s1 = inlined_call_operand.hbm [shape: f32[2,4,2,128], index: 1, kind: input, shape index: {}]
  %s2 = inlined_call_operand.hbm [shape: f32[2,12,2,128], index: 2, kind: output, shape index: {}]
  %s3 = sld [smem:[#allocation0]]
  $region53: #{tpu_custom_call.1} parent=0
    _
  %s5 = ssub.s32 1, %s3
  %s6 = scalar_select 0, %s5, %s3
  $region1: #{tpu_custom_call.1} parent=0
    #allocation2 [shape = 'u8[8192]{0}', space=vmem, size = 0x2000, scoped, tag = 'input window, operand 0']
    #allocation3 [shape = 's32[2]{0}', space=sflag, size = 0x8, scoped, tag = 'scoped memory for tpu_custom_call.1']
    #allocation4 [shape = 's32[2]{0}', space=sflag, size = 0x8, scoped, tag = 'scoped memory for tpu_custom_call.1']
    #allocation5 [shape = 'u8[8192]{0}', space=vmem, size = 0x2000, scoped, tag = 'input window, operand 1']
    #allocation6 [shape = 's32[2]{0}', space=sflag, size = 0x8, scoped, tag = 'scoped memory for tpu_custom_call.1']
    #allocation7 [shape = 'u8[24576]{0}', space=vmem, size = 0x6000, scoped, tag = 'output window, operand 0']
    %7 = vsyncpa [#allocation3], 0
    %s8 = scalar_lea.sflag [#allocation3], 1
    %9 = vsyncpa %s8, 0
    %10 = vsyncpa [#allocation6], 0
    %s11 = scalar_lea.sflag [#allocation6], 1
    %12 = vsyncpa %s11, 0
    %13 = vsyncpa [#allocation4], 0
    %s14 = scalar_lea.sflag [#allocation4], 1
    %15 = vsyncpa %s14, 0
    loop: start=0, step=1, limit=4
    $region2: #{tpu_custom_call.1} parent=1 // loop_pre_header
      _
    $region3: #{tpu_custom_call.1} parent=1 // loop_header
      %s17 = sphi 0, %s21
      %p18 = scmp.ge.s32.totalorder %s17, 4
      %s24 = sphi 0, %s43
      %s25 = sphi 0, %s39
      %s26 = sphi 0, %s35
      %s27 = sphi 0, %s24
      %s28 = sphi 0, %s25
      %s29 = sphi 0, %s26
      %s30 = sphi 0, %s27
      %s31 = sphi 0, %s28
      %s32 = sphi 0, %s29
      %s50 = sphi 0, %s52
      %s53 = sphi 0, %s50
      %s54 = sphi 0, %s53
      %s70 = sphi 0, %s54
      %s80 = sphi 0, %s82
      %s83 = sphi 0, %s80
      %s84 = sphi 0, %s83
      %s100 = sphi 0, %s84
      %s110 = sphi 0, %s112
      %s113 = sphi 0, %s110
      %s114 = sphi 0, %s113
      %s130 = sphi 0, %s114
    $region4: #{tpu_custom_call.1} parent=1 // loop_header_branch
      %20 = sbr.rel (%p18) target = $region8
    $region5: #{tpu_custom_call.1} parent=1 // loop_body
      %s22 = ssub.s32 %s17, 1
      %s23 = ssub.s32 %s17, 2
      %s33 = sadd.s32 1, %s26
      %p34 = scmp.ge.s32.totalorder %s33, 1
      %s35 = scalar_select %p34, 0, %s33
      %s36 = sadd.s32 1, %s25
      %s37 = scalar_select %p34, %s36, %s25
      %p38 = scmp.ge.s32.totalorder %s37, 2
      %s39 = scalar_select %p38, 0, %s37
      %s40 = sadd.s32 1, %s24
      %s41 = scalar_select %p38, %s40, %s24
      %p42 = scmp.ge.s32.totalorder %s41, 1
      %s43 = scalar_select %p42, 0, %s41
      %s44 = sadd.s32 %s24, %s26
      %s45 = sadd.s32 %s43, %s35
      %s46 = ssub.s32 %s25, %s39
      %s47 = ssub.s32 %s44, %s45
      %s48 = sor.u32 %s46, %s47
      %p49 = scmp.eq.s32.totalorder %s48, 0
      %s51 = sadd.s32 %s50, 1
      %s52 = scalar_select %p49, %s50, %s51
      %p55 = pneg %p49
      %p56 = scmp.eq.s32.totalorder %s17, 1
      %p57 = por %p55, %p56
      %p58 = scmp.ne.s32.totalorder %s50, %s53
      %p59 = scmp.eq.s32.totalorder %s17, 0
      %p60 = por %p58, %p59
      %p61 = scmp.ne.s32.totalorder %s50, %s53
      %p62 = scmp.eq.s32.totalorder %s22, 1
      %p63 = por %p61, %p62
      %p64 = scmp.ne.s32.totalorder %s53, %s54
      %p65 = scmp.eq.s32.totalorder %s22, 0
      %p66 = por %p64, %p65
      %p67 = scmp.ne.s32.totalorder %s53, %s54
      %p68 = scmp.eq.s32.totalorder %s23, 1
      %p69 = por %p67, %p68
      %p71 = scmp.ne.s32.totalorder %s54, %s70
      %p72 = scmp.eq.s32.totalorder %s23, 0
      %p73 = por %p71, %p72
      %s74 = sadd.s32 %s24, %s26
      %s75 = sadd.s32 %s43, %s35
      %s76 = ssub.s32 %s25, %s39
      %s77 = ssub.s32 %s74, %s75
      %s78 = sor.u32 %s76, %s77
      %p79 = scmp.eq.s32.totalorder %s78, 0
      %s81 = sadd.s32 %s80, 1
      %s82 = scalar_select %p79, %s80, %s81
      %p85 = pneg %p79
      %p86 = scmp.eq.s32.totalorder %s17, 1
      %p87 = por %p85, %p86
      %p88 = scmp.ne.s32.totalorder %s80, %s83
      %p89 = scmp.eq.s32.totalorder %s17, 0
      %p90 = por %p88, %p89
      %p91 = scmp.ne.s32.totalorder %s80, %s83
      %p92 = scmp.eq.s32.totalorder %s22, 1
      %p93 = por %p91, %p92
      %p94 = scmp.ne.s32.totalorder %s83, %s84
      %p95 = scmp.eq.s32.totalorder %s22, 0
      %p96 = por %p94, %p95
      %p97 = scmp.ne.s32.totalorder %s83, %s84
      %p98 = scmp.eq.s32.totalorder %s23, 1
      %p99 = por %p97, %p98
      %p101 = scmp.ne.s32.totalorder %s84, %s100
      %p102 = scmp.eq.s32.totalorder %s23, 0
      %p103 = por %p101, %p102
      %s104 = smul.u32 %s24, 2
      %s105 = sadd.s32 %s104, %s25
      %s106 = smul.u32 %s43, 2
      %s107 = sadd.s32 %s106, %s39
      %s108 = ssub.s32 %s105, %s107
      %p109 = scmp.eq.s32.totalorder %s108, 0
      %s111 = sadd.s32 %s110, 1
      %s112 = scalar_select %p109, %s110, %s111
      %p115 = pneg %p109
      %p116 = scmp.eq.s32.totalorder %s17, 1
      %p117 = por %p115, %p116
      %p118 = scmp.ne.s32.totalorder %s110, %s113
      %p119 = scmp.eq.s32.totalorder %s17, 0
      %p120 = por %p118, %p119
      %p121 = scmp.ne.s32.totalorder %s110, %s113
      %p122 = scmp.eq.s32.totalorder %s22, 1
      %p123 = por %p121, %p122
      %p124 = scmp.ne.s32.totalorder %s113, %s114
      %p125 = scmp.eq.s32.totalorder %s22, 0
      %p126 = por %p124, %p125
      %p127 = scmp.ne.s32.totalorder %s113, %s114
      %p128 = scmp.eq.s32.totalorder %s23, 1
      %p129 = por %p127, %p128
      %p131 = scmp.ne.s32.totalorder %s114, %s130
      %p132 = scmp.eq.s32.totalorder %s23, 0
      %p133 = por %p131, %p132
      %p134 = scmp.le.s32.totalorder 1, %s17
      %p135 = scmp.lt.s32.totalorder %s17, 3
      %p136 = pnand %p134, %p135
      %p137 = pneg %p136
      // Predicated region
      $region9: #{tpu_custom_call.1} parent=5 // pred_check
        _
      $region10: #{tpu_custom_call.1} parent=5 // pred_check_branch
        %139 = sbr.rel (%p136) target = $region12
      $region11: #{tpu_custom_call.1} parent=5 // pred_region
        %s140 = ssub.s32 %s17, 1
      $region12: #{tpu_custom_call.1} parent=5 // pred_fallthru
        _
      %p141 = scmp.lt.s32.totalorder %s17, 2
      // Predicated region
      $region13: #{tpu_custom_call.1} parent=5 // pred_check
        %p142 = pneg %p141
      $region14: #{tpu_custom_call.1} parent=5 // pred_check_branch
        %144 = sbr.rel (%p142) target = $region16
      $region15: #{tpu_custom_call.1} parent=5 // pred_region
        // Predicated region
        $region17: #{tpu_custom_call.1} parent=15 // pred_check
          %p145 = pneg %p60
        $region18: #{tpu_custom_call.1} parent=15 // pred_check_branch
          %147 = sbr.rel (%p145) target = $region20
        $region19: #{tpu_custom_call.1} parent=15 // pred_region
          %s148 = sand.u32 %s50, 1
          %s149 = scalar_lea.sflag [#allocation3], %s148
          %s150 = sand.u32 %s50, 1
          %s151 = smul.addr %s150, 8
          %s152 = scalar_lea.vmem [#allocation2], %s151
          %s153 = sadd.s32 %s24, %s26
          %155 = vsyncadd %s149, 0
          %s156 = smul.addr %s25, 4
          %s157 = sadd.s32 %s153, %s156
          %s158 = smul.addr %s157, 2
          %s159 = scalar_lea.hbm %s0, %s158
          %s160 = sshll.u32 %s159, 4
          %s161 = int_to_ptr.hbm [resolvable:$true] %s160
          %s162 = sshll.u32 %s152, 4
          %s163 = int_to_ptr.vmem [resolvable:$true] %s162
          %168 = dma.hbm_to_vmem [thread:$0]  %s161, 128, %s163, %s149, 32, 32, 2
        $region20: #{tpu_custom_call.1} parent=15 // pred_fallthru
          _
        // Predicated region
        $region21: #{tpu_custom_call.1} parent=15 // pred_check
          %p169 = pneg %p90
        $region22: #{tpu_custom_call.1} parent=15 // pred_check_branch
          %171 = sbr.rel (%p169) target = $region24
        $region23: #{tpu_custom_call.1} parent=15 // pred_region
          %s172 = sand.u32 %s80, 1
          %s173 = scalar_lea.sflag [#allocation6], %s172
          %s174 = sand.u32 %s80, 1
          %s175 = smul.addr %s174, 8
          %s176 = scalar_lea.vmem [#allocation5], %s175
          %s177 = sadd.s32 %s24, %s26
          %179 = vsyncadd %s173, 0
          %s180 = smul.addr %s25, 4
          %s181 = sadd.s32 %s177, %s180
          %s182 = smul.addr %s181, 2
          %s183 = scalar_lea.hbm %s1, %s182
          %s184 = sshll.u32 %s183, 4
          %s185 = int_to_ptr.hbm [resolvable:$true] %s184
          %s186 = sshll.u32 %s176, 4
          %s187 = int_to_ptr.vmem [resolvable:$true] %s186
          %192 = dma.hbm_to_vmem [thread:$0]  %s185, 128, %s187, %s173, 32, 32, 2
        $region24: #{tpu_custom_call.1} parent=15 // pred_fallthru
          _
      $region16: #{tpu_custom_call.1} parent=5 // pred_fallthru
        _
      %p193 = scmp.le.s32.totalorder 1, %s17
      %p194 = scmp.lt.s32.totalorder %s17, 3
      %p195 = pnand %p193, %p194
      %p196 = pneg %p195
      // Predicated region
      $region25: #{tpu_custom_call.1} parent=5 // pred_check
        _
      $region26: #{tpu_custom_call.1} parent=5 // pred_check_branch
        %198 = sbr.rel (%p195) target = $region28
      $region27: #{tpu_custom_call.1} parent=5 // pred_region
        %s199 = ssub.s32 %s17, 1
        %s200 = sand.u32 %s53, 1
        %s201 = scalar_lea.sflag [#allocation3], %s200
        %s202 = sand.u32 %s53, 1
        %s203 = smul.addr %s202, 8
        %s204 = scalar_lea.vmem [#allocation2], %s203
        // Predicated region
        $region29: #{tpu_custom_call.1} parent=27 // pred_check
          %p205 = pneg %p66
        $region30: #{tpu_custom_call.1} parent=27 // pred_check_branch
          %207 = sbr.rel (%p205) target = $region32
        $region31: #{tpu_custom_call.1} parent=27 // pred_region
          %209 = dma.done %s201, 128
        $region32: #{tpu_custom_call.1} parent=27 // pred_fallthru
          _
        %s210 = sand.u32 %s83, 1
        %s211 = scalar_lea.sflag [#allocation6], %s210
        %s212 = sand.u32 %s83, 1
        %s213 = smul.addr %s212, 8
        %s214 = scalar_lea.vmem [#allocation5], %s213
        // Predicated region
        $region33: #{tpu_custom_call.1} parent=27 // pred_check
          %p215 = pneg %p96
        $region34: #{tpu_custom_call.1} parent=27 // pred_check_branch
          %217 = sbr.rel (%p215) target = $region36
        $region35: #{tpu_custom_call.1} parent=27 // pred_region
          %219 = dma.done %s211, 128
        $region36: #{tpu_custom_call.1} parent=27 // pred_fallthru
          _
        %s220 = sand.u32 %s53, 1
        %s221 = scalar_lea.sflag [#allocation3], %s220
        %s222 = sand.u32 %s53, 1
        %s223 = smul.addr %s222, 8
        %s224 = scalar_lea.vmem [#allocation2], %s223
        %p225 = pneg %p66
        %p226 = pneg %p63
        %s227 = sand.u32 %s83, 1
        %s228 = scalar_lea.sflag [#allocation6], %s227
        %s229 = sand.u32 %s83, 1
        %s230 = smul.addr %s229, 8
        %s231 = scalar_lea.vmem [#allocation5], %s230
        %p232 = pneg %p96
        %p233 = pneg %p93
        %p234 = pneg %p126
        %p235 = pneg %p123
        %s236 = sand.u32 %s113, 1
        %s237 = scalar_lea.sflag [#allocation4], %s236
        %s238 = sand.u32 %s113, 1
        %s239 = smul.addr %s238, 24
        %s240 = scalar_lea.vmem [#allocation7], %s239
        %s241 = sadd.s32 %s27, %s29
        %s242 = sadd.s32 %s27, %s29
        %s243 = smul.u32 %s27, 2
        %s244 = sadd.s32 %s243, %s28
        %p245 = scmp.eq.s32.totalorder %s29, 0
        // Predicated region
        $region37: #{tpu_custom_call.1} parent=27 // pred_check
          %p246 = pneg %p245
        $region38: #{tpu_custom_call.1} parent=27 // pred_check_branch
          %248 = sbr.rel (%p246) target = $region40
        $region39: #{tpu_custom_call.1} parent=27 // pred_region
          %249 = vst [vmem:[%s240] sm:$0x3] 0.0
          %250 = vst [vmem:[%s240 + $0x2] sm:$0x3] 0.0
          %251 = vst [vmem:[%s240 + $0x4] sm:$0x3] 0.0
          %252 = vst [vmem:[%s240 + $0x6] sm:$0x3] 0.0
          %253 = vst [vmem:[%s240 + $0x8] sm:$0x3] 0.0
          %254 = vst [vmem:[%s240 + $0xa] sm:$0x3] 0.0
          %255 = vst [vmem:[%s240 + $0xc] sm:$0x3] 0.0
          %256 = vst [vmem:[%s240 + $0xe] sm:$0x3] 0.0
          %257 = vst [vmem:[%s240 + $0x10] sm:$0x3] 0.0
          %258 = vst [vmem:[%s240 + $0x12] sm:$0x3] 0.0
          %259 = vst [vmem:[%s240 + $0x14] sm:$0x3] 0.0
          %260 = vst [vmem:[%s240 + $0x16] sm:$0x3] 0.0
        $region40: #{tpu_custom_call.1} parent=27 // pred_fallthru
          _
        %v261 = vld [vmem:[%s204] sm:$0x3]
        %s262 = scalar_lea.vmem %s204, 2 [#allocation2]
        %v263 = vld [vmem:[%s262] sm:$0x3]
        %s264 = scalar_lea.vmem %s204, 4 [#allocation2]
        %v265 = vld [vmem:[%s264] sm:$0x3]
        %s266 = scalar_lea.vmem %s204, 6 [#allocation2]
        %v267 = vld [vmem:[%s266] sm:$0x3]
        %v268 = vmax.f32 %v261, %v263
        %v269 = vmax.f32 %v268, %v265
        %v270 = vmax.f32 %v269, %v267
        %v271 = vsub.f32 %v261, %v270
        %v272 = vmul.f32 %v271, 1.442695
        %v273 = vpow.pop %v272
        %v274 = vsub.f32 %v263, %v270
        %v275 = vmul.f32 %v274, 1.442695
        %v276 = vpow.pop %v275
        %v277 = vsub.f32 %v265, %v270
        %v278 = vmul.f32 %v277, 1.442695
        %v279 = vpow.pop %v278
        %v280 = vsub.f32 %v267, %v270
        %v281 = vmul.f32 %v280, 1.442695
        %v282 = vpow.pop %v281
        %v283 = vadd.f32 %v273, %v276
        %v284 = vadd.f32 %v283, %v279
        %v285 = vadd.f32 %v284, %v282
        %v286 = vrcp.pop %v285
        %v287 = vmul.f32 %v273, %v286
        %v288 = vmul.f32 %v276, %v286
        %v289 = vmul.f32 %v279, %v286
        %v290 = vmul.f32 %v282, %v286
        %v291 = vld [vmem:[%s214] sm:$0x3]
        %v292 = vld [vmem:[%s240] sm:$0x3]
        %v293 = vmul.f32 %v287, %v291
        %v294 = vadd.f32 %v292, %v293
        %295 = vst [vmem:[%s240] sm:$0x3] %v294
        %s296 = scalar_lea.vmem %s240, 8 [#allocation7]
        %v297 = vld [vmem:[%s296] sm:$0x3]
        %v298 = vadd.f32 %v297, %v291
        %299 = vst [vmem:[%s296] sm:$0x3] %v298
        %s300 = scalar_lea.vmem %s240, 16 [#allocation7]
        %v301 = vld [vmem:[%s300] sm:$0x3]
        %v302 = vadd.f32 %v301, %v287
        %303 = vst [vmem:[%s300] sm:$0x3] %v302
        %s304 = scalar_lea.vmem %s214, 2 [#allocation5]
        %v305 = vld [vmem:[%s304] sm:$0x3]
        %s306 = scalar_lea.vmem %s240, 2 [#allocation7]
        %v307 = vld [vmem:[%s306] sm:$0x3]
        %v308 = vmul.f32 %v288, %v305
        %v309 = vadd.f32 %v307, %v308
        %310 = vst [vmem:[%s306] sm:$0x3] %v309
        %s311 = scalar_lea.vmem %s240, 10 [#allocation7]
        %v312 = vld [vmem:[%s311] sm:$0x3]
        %v313 = vadd.f32 %v312, %v305
        %314 = vst [vmem:[%s311] sm:$0x3] %v313
        %s315 = scalar_lea.vmem %s240, 18 [#allocation7]
        %v316 = vld [vmem:[%s315] sm:$0x3]
        %v317 = vadd.f32 %v316, %v288
        %318 = vst [vmem:[%s315] sm:$0x3] %v317
        %s319 = scalar_lea.vmem %s214, 4 [#allocation5]
        %v320 = vld [vmem:[%s319] sm:$0x3]
        %s321 = scalar_lea.vmem %s240, 4 [#allocation7]
        %v322 = vld [vmem:[%s321] sm:$0x3]
        %v323 = vmul.f32 %v289, %v320
        %v324 = vadd.f32 %v322, %v323
        %325 = vst [vmem:[%s321] sm:$0x3] %v324
        %s326 = scalar_lea.vmem %s240, 12 [#allocation7]
        %v327 = vld [vmem:[%s326] sm:$0x3]
        %v328 = vadd.f32 %v327, %v320
        %329 = vst [vmem:[%s326] sm:$0x3] %v328
        %s330 = scalar_lea.vmem %s240, 20 [#allocation7]
        %v331 = vld [vmem:[%s330] sm:$0x3]
        %v332 = vadd.f32 %v331, %v289
        %333 = vst [vmem:[%s330] sm:$0x3] %v332
        %s334 = scalar_lea.vmem %s214, 6 [#allocation5]
        %v335 = vld [vmem:[%s334] sm:$0x3]
        %s336 = scalar_lea.vmem %s240, 6 [#allocation7]
        %v337 = vld [vmem:[%s336] sm:$0x3]
        %v338 = vmul.f32 %v290, %v335
        %v339 = vadd.f32 %v337, %v338
        %340 = vst [vmem:[%s336] sm:$0x3] %v339
        %s341 = scalar_lea.vmem %s240, 14 [#allocation7]
        %v342 = vld [vmem:[%s341] sm:$0x3]
        %v343 = vadd.f32 %v342, %v335
        %344 = vst [vmem:[%s341] sm:$0x3] %v343
        %s345 = scalar_lea.vmem %s240, 22 [#allocation7]
        %v346 = vld [vmem:[%s345] sm:$0x3]
        %v347 = vadd.f32 %v346, %v290
        %348 = vst [vmem:[%s345] sm:$0x3] %v347
        %s349 = sand.u32 %s113, 1
        %s350 = scalar_lea.sflag [#allocation4], %s349
        %s351 = sand.u32 %s113, 1
        %s352 = smul.addr %s351, 24
        %s353 = scalar_lea.vmem [#allocation7], %s352
        // Predicated region
        $region41: #{tpu_custom_call.1} parent=27 // pred_check
          %p354 = pneg %p123
        $region42: #{tpu_custom_call.1} parent=27 // pred_check_branch
          %356 = sbr.rel (%p354) target = $region44
        $region43: #{tpu_custom_call.1} parent=27 // pred_region
          %s357 = smul.u32 %s27, 2
          %s358 = sadd.s32 %s357, %s28
          %360 = vsyncadd %s350, 0
          %s361 = smul.addr %s358, 12
          %s362 = smul.addr %s361, 2
          %s363 = scalar_lea.hbm %s2, %s362
          %s364 = sshll.u32 %s353, 4
          %s365 = int_to_ptr.vmem [resolvable:$true] %s364
          %s366 = sshll.u32 %s363, 4
          %s367 = int_to_ptr.hbm [resolvable:$true] %s366
          %372 = dma.vmem_to_hbm [thread:$0]  %s365, 384, %s367, %s350, 32, 32, 2
        $region44: #{tpu_custom_call.1} parent=27 // pred_fallthru
          _
      $region28: #{tpu_custom_call.1} parent=5 // pred_fallthru
        _
      %p373 = scmp.le.s32.totalorder 2, %s17
      // Predicated region
      $region45: #{tpu_custom_call.1} parent=5 // pred_check
        %p374 = pneg %p373
      $region46: #{tpu_custom_call.1} parent=5 // pred_check_branch
        %376 = sbr.rel (%p374) target = $region48
      $region47: #{tpu_custom_call.1} parent=5 // pred_region
        %s377 = ssub.s32 %s17, 2
        // Predicated region
        $region49: #{tpu_custom_call.1} parent=47 // pred_check
          %p378 = pneg %p129
        $region50: #{tpu_custom_call.1} parent=47 // pred_check_branch
          %380 = sbr.rel (%p378) target = $region52
        $region51: #{tpu_custom_call.1} parent=47 // pred_region
          %s381 = sand.u32 %s114, 1
          %s382 = scalar_lea.sflag [#allocation4], %s381
          %s383 = sand.u32 %s114, 1
          %s384 = smul.addr %s383, 24
          %s385 = scalar_lea.vmem [#allocation7], %s384
          %387 = dma.done %s382, 384
        $region52: #{tpu_custom_call.1} parent=47 // pred_fallthru
          _
      $region48: #{tpu_custom_call.1} parent=5 // pred_fallthru
        _
    $region6: #{tpu_custom_call.1} parent=1 // loop_footer
      %s21 = sadd.s32 1, %s17
    $region7: #{tpu_custom_call.1} parent=1 // loop_footer_branch
      %16 = sbr.rel target = $region3
    $region8: #{tpu_custom_call.1} parent=1 // loop_exit
      _
    %388 = vsyncpa [#allocation3], 1
    %s389 = scalar_lea.sflag [#allocation3], 1
    %390 = vsyncpa %s389, 1
    %391 = vsyncpa [#allocation6], 1
    %s392 = scalar_lea.sflag [#allocation6], 1
    %393 = vsyncpa %s392, 1
    %394 = vsyncpa [#allocation4], 1
    %s395 = scalar_lea.sflag [#allocation4], 1
    %396 = vsyncpa %s395, 1

</llo_original>
